<compile_context>
chip_gen: v7x
topology: tpu7x:2x2x1
jax: 0.10.0
libtpu: 0.0.40
codegen_flags: <defaults>
</compile_context>

<pallas_src>
import jax
import jax.numpy as jnp
from jax.experimental import pallas as pl
from jax.experimental.pallas import tpu as pltpu

N_IN = 128    # fc1 in_features
N_HID = 64    # fc1 out_features / fc2 in_features
N_OUT = 3     # fc2 out_features (real logits)
N_PAD = 128   # lane-dense padded logit width


def _emotion_kernel(x_ref, w1_ref, b1_ref, w2_ref, b2_ref, o_ref):
    # fc1: bf16 MXU inputs, f32 accumulation, then bias + ReLU (all post-matmul in f32).
    x_bf = x_ref[...].astype(jnp.bfloat16)
    h = jnp.dot(x_bf, w1_ref[...], preferred_element_type=jnp.float32) + b1_ref[...]
    h = jnp.maximum(h, 0.0)

    # fc2 with lane-padded (64, 128) weights. Padding columns have zero weight and a
    # -1e30 bias, so they never win the max and contribute exp ~= 0 to the logsumexp.
    z = jnp.dot(h, w2_ref[...], preferred_element_type=jnp.float32) + b2_ref[...]

    # Numerically stable log-softmax over the (padded) logit lanes == log-softmax over
    # the first 3 real columns.
    m = jnp.max(z, axis=-1, keepdims=True)
    e = jnp.exp(z - m)
    lse = m + jnp.log(jnp.sum(e, axis=-1, keepdims=True))
    o_ref[...] = (z - lse).astype(o_ref.dtype)


def emotion_classifier(x, w1, b1, w2, b2, *, tb=512):
    """x: (B, 128) f32, w1: (128, 64), b1: (64,), w2: (64, 3), b2: (3,)
    -> (B, 3) f32 log-probabilities."""
    B = x.shape[0]

    # Parameters: bf16 fc1 weight for the MXU, lane-dense padded fc2 params.
    w1_bf = w1.astype(jnp.bfloat16)
    b1_r = jnp.asarray(b1, jnp.float32).reshape(1, N_HID)
    w2_p = jnp.zeros((N_HID, N_PAD), jnp.float32).at[:, :N_OUT].set(
        jnp.asarray(w2, jnp.float32))
    b2_p = jnp.full((1, N_PAD), -1e30, jnp.float32).at[:, :N_OUT].set(
        jnp.asarray(b2, jnp.float32).reshape(1, N_OUT))

    # Batch tile: multiple of 8 sublanes, capped at `tb` (512 default keeps the
    # double-buffered working set ~1 MiB -> safe on v7x's 64 MiB VMEM too).
    tb = min(tb, max(8, ((B + 7) // 8) * 8))
    b_pad = ((B + tb - 1) // tb) * tb
    if b_pad != B:
        x = jnp.pad(x, ((0, b_pad - B), (0, 0)))
    grid = (b_pad // tb,)

    const2 = lambda i: (0, 0)  # weights/biases: same block every step -> VMEM-resident

    param_bytes = (N_IN * N_HID * 2 + N_HID * 4 + N_HID * N_PAD * 4 + N_PAD * 4)
    cost = pl.CostEstimate(
        flops=2 * b_pad * (N_IN * N_HID + N_HID * N_PAD),
        transcendentals=b_pad * (N_PAD + 1),           # exp lanes + log per row
        bytes_accessed=b_pad * (N_IN * 4 + N_PAD * 4) + param_bytes,
    )

    out = pl.pallas_call(
        _emotion_kernel,
        out_shape=jax.ShapeDtypeStruct((b_pad, N_PAD), jnp.float32),
        grid=grid,
        in_specs=[
            pl.BlockSpec((tb, N_IN), lambda i: (i, 0)),     # streamed batch tile
            pl.BlockSpec((N_IN, N_HID), const2),            # w1 (bf16), resident
            pl.BlockSpec((1, N_HID), const2),               # b1, resident
            pl.BlockSpec((N_HID, N_PAD), const2),           # padded w2, resident
            pl.BlockSpec((1, N_PAD), const2),               # padded b2, resident
        ],
        out_specs=pl.BlockSpec((tb, N_PAD), lambda i: (i, 0)),
        compiler_params=pltpu.CompilerParams(
            dimension_semantics=("parallel",)),             # megacore split on v7x
        cost_estimate=cost,
    )(x, w1_bf, b1_r, w2_p, b2_p)

    return out[:B, :N_OUT]


def init_params(key):
    """Deterministic synthetic params matching nn.Linear(128,64) / nn.Linear(64,3)."""
    k1, k2, k3, k4 = jax.random.split(key, 4)
    lim1 = 1.0 / jnp.sqrt(128.0)
    lim2 = 1.0 / jnp.sqrt(64.0)
    # Stored as (in, out) so the kernel does x @ W (equivalent to x @ W_pt.T).
    w1 = jax.random.uniform(k1, (128, 64), jnp.float32, -lim1, lim1)
    b1 = jax.random.uniform(k2, (64,), jnp.float32, -lim1, lim1)
    w2 = jax.random.uniform(k3, (64, 3), jnp.float32, -lim2, lim2)
    b2 = jax.random.uniform(k4, (3,), jnp.float32, -lim2, lim2)
    return w1, b1, w2, b2


if __name__ == "__main__":
    key = jax.random.PRNGKey(0)
    kx, kp = jax.random.split(key)
    B = 8
    x = jax.random.normal(kx, (B, 128), jnp.float32)
    w1, b1, w2, b2 = init_params(kp)

    out = jax.block_until_ready(emotion_classifier(x, w1, b1, w2, b2))
    assert out.shape == (B, N_OUT)

    # Reference in pure f32 (kernel uses bf16 MXU inputs for fc1 -> looser tolerance).
    h_ref = jnp.maximum(x @ w1 + b1[None, :], 0.0)
    z_ref = h_ref @ w2 + b2[None, :]
    ref = jax.nn.log_softmax(z_ref, axis=1)
    assert jnp.allclose(out, ref, atol=2e-2, rtol=2e-2), (
        float(jnp.max(jnp.abs(out - ref))))
    # Log-probabilities must (approximately) normalize per row.
    assert jnp.allclose(jnp.sum(jnp.exp(out), axis=1), 1.0, atol=1e-3)

    print("KERNEL_OK")
</pallas_src>

<mosaic_0001>
module attributes {stable_mosaic.version = 11 : i64} {
  func.func @_emotion_kernel(%arg0: i32, %arg1: memref<8x128xf32, #tpu.memory_space<vmem>>, %arg2: memref<128x64xbf16, #tpu.memory_space<vmem>>, %arg3: memref<1x64xf32, #tpu.memory_space<vmem>>, %arg4: memref<64x128xf32, #tpu.memory_space<vmem>>, %arg5: memref<1x128xf32, #tpu.memory_space<vmem>>, %arg6: memref<8x128xf32, #tpu.memory_space<vmem>>) attributes {dimension_semantics = [#tpu.dimension_semantics<parallel>], iteration_bounds = array<i64: 1>, scalar_prefetch = 0 : i64, scratch_operands = 0 : i64, tpu.core_type = #tpu.core_type<tc>, window_params = [{transform_indices = @transform_0, window_bounds = array<i64: 8, 128>}, {pipeline_mode = #tpu.pipeline_mode<synchronous>, transform_indices = @transform_1, window_bounds = array<i64: 128, 64>}, {pipeline_mode = #tpu.pipeline_mode<synchronous>, transform_indices = @transform_2, window_bounds = array<i64: 1, 64>}, {pipeline_mode = #tpu.pipeline_mode<synchronous>, transform_indices = @transform_3, window_bounds = array<i64: 64, 128>}, {pipeline_mode = #tpu.pipeline_mode<synchronous>, transform_indices = @transform_4, window_bounds = array<i64: 1, 128>}, {transform_indices = @transform_5, window_bounds = array<i64: 8, 128>}]} {
    %c0 = arith.constant 0 : index
    %c0_0 = arith.constant 0 : index
    %0 = vector.load %arg1[%c0, %c0_0] : memref<8x128xf32, #tpu.memory_space<vmem>>, vector<8x128xf32>
    %1 = arith.truncf %0 : vector<8x128xf32> to vector<8x128xbf16>
    %c0_1 = arith.constant 0 : index
    %c0_2 = arith.constant 0 : index
    %2 = vector.load %arg2[%c0_1, %c0_2] : memref<128x64xbf16, #tpu.memory_space<vmem>>, vector<128x64xbf16>
    %cst = arith.constant dense<0.000000e+00> : vector<8x64xf32>
    %3 = tpu.matmul %1, %2, %cst {dimension_numbers = #tpu.dot_dimension_numbers<[1], [0], [0], [1], [0, 0, 1, 1], [], []>} : vector<8x128xbf16>, vector<128x64xbf16>, vector<8x64xf32> -> vector<8x64xf32>
    %c0_3 = arith.constant 0 : index
    %c0_4 = arith.constant 0 : index
    %4 = vector.load %arg3[%c0_3, %c0_4] : memref<1x64xf32, #tpu.memory_space<vmem>>, vector<1x64xf32>
    %5 = vector.broadcast %4 : vector<1x64xf32> to vector<8x64xf32>
    %6 = arith.addf %3, %5 : vector<8x64xf32>
    %cst_5 = arith.constant 0.000000e+00 : f32
    %7 = vector.broadcast %cst_5 : f32 to vector<8x64xf32>
    %8 = arith.maximumf %6, %7 : vector<8x64xf32>
    %c0_6 = arith.constant 0 : index
    %c0_7 = arith.constant 0 : index
    %9 = vector.load %arg4[%c0_6, %c0_7] : memref<64x128xf32, #tpu.memory_space<vmem>>, vector<64x128xf32>
    %cst_8 = arith.constant dense<0.000000e+00> : vector<8x128xf32>
    %10 = tpu.matmul %8, %9, %cst_8 {dimension_numbers = #tpu.dot_dimension_numbers<[1], [0], [0], [1], [0, 0, 1, 1], [], []>} : vector<8x64xf32>, vector<64x128xf32>, vector<8x128xf32> -> vector<8x128xf32>
    %c0_9 = arith.constant 0 : index
    %c0_10 = arith.constant 0 : index
    %11 = vector.load %arg5[%c0_9, %c0_10] : memref<1x128xf32, #tpu.memory_space<vmem>>, vector<1x128xf32>
    %12 = vector.broadcast %11 : vector<1x128xf32> to vector<8x128xf32>
    %13 = arith.addf %10, %12 : vector<8x128xf32>
    %cst_11 = arith.constant dense<0xFF800000> : vector<8xf32>
    %14 = vector.multi_reduction <maximumf>, %13, %cst_11 [1] : vector<8x128xf32> to vector<8xf32>
    %15 = vector.shape_cast %14 : vector<8xf32> to vector<8x1xf32>
    %16 = vector.broadcast %15 : vector<8x1xf32> to vector<8x128xf32>
    %17 = arith.subf %13, %16 : vector<8x128xf32>
    %18 = math.exp %17 : vector<8x128xf32>
    %cst_12 = arith.constant dense<0.000000e+00> : vector<8xf32>
    %19 = vector.multi_reduction <add>, %18, %cst_12 [1] : vector<8x128xf32> to vector<8xf32>
    %20 = vector.shape_cast %19 : vector<8xf32> to vector<8x1xf32>
    %21 = math.log %20 : vector<8x1xf32>
    %22 = arith.addf %15, %21 : vector<8x1xf32>
    %23 = vector.broadcast %22 : vector<8x1xf32> to vector<8x128xf32>
    %24 = arith.subf %13, %23 : vector<8x128xf32>
    %c0_13 = arith.constant 0 : index
    %c0_14 = arith.constant 0 : index
    %25 = vector.load %arg6[%c0_13, %c0_14] : memref<8x128xf32, #tpu.memory_space<vmem>>, vector<8x128xf32>
    tpu.vector_store %arg6[%c0_13, %c0_14], %24 {strides = array<i32>} : memref<8x128xf32, #tpu.memory_space<vmem>>, vector<8x128xf32>,
    return
  }
  func.func @transform_0(%arg0: i32) -> (i32, i32) {
    %c0_i32 = arith.constant 0 : i32
    %c0_i32_0 = arith.constant 0 : i32
    return %arg0, %c0_i32 : i32, i32
  }
  func.func @transform_1(%arg0: i32) -> (i32, i32) {
    %c0_i32 = arith.constant 0 : i32
    %c0_i32_0 = arith.constant 0 : i32
    %c0_i32_1 = arith.constant 0 : i32
    return %c0_i32, %c0_i32_0 : i32, i32
  }
  func.func @transform_2(%arg0: i32) -> (i32, i32) {
    %c0_i32 = arith.constant 0 : i32
    %c0_i32_0 = arith.constant 0 : i32
    %c0_i32_1 = arith.constant 0 : i32
    return %c0_i32, %c0_i32_0 : i32, i32
  }
  func.func @transform_3(%arg0: i32) -> (i32, i32) {
    %c0_i32 = arith.constant 0 : i32
    %c0_i32_0 = arith.constant 0 : i32
    %c0_i32_1 = arith.constant 0 : i32
    return %c0_i32, %c0_i32_0 : i32, i32
  }
  func.func @transform_4(%arg0: i32) -> (i32, i32) {
    %c0_i32 = arith.constant 0 : i32
    %c0_i32_0 = arith.constant 0 : i32
    %c0_i32_1 = arith.constant 0 : i32
    return %c0_i32, %c0_i32_0 : i32, i32
  }
  func.func @transform_5(%arg0: i32) -> (i32, i32) {
    %c0_i32 = arith.constant 0 : i32
    %c0_i32_0 = arith.constant 0 : i32
    return %arg0, %c0_i32 : i32, i32
  }
}

</mosaic_0001>

<llo_original>
// kernel: tpu_custom_call.1
$region0: #{tpu_custom_call.1}
  #allocation0 [shape = 'u32[]', space=smem, size = 0x4, offset = 0x4, fixed_abs, tag = 'smem constant byte address 0x4 - core index']
  #allocation1 [shape = 'u32[144,128]{1,0:T(1,128)}', space=vmem, size = 0x12000, scoped, tag = 'internal scratch']
  %s0 = inlined_call_operand.vmem [shape: f32[8,128], index: 0, kind: input, shape index: {}]
  %s1 = inlined_call_operand.vmem [shape: bf16[128,64], index: 1, kind: input, shape index: {}]
  %s2 = inlined_call_operand.vmem [shape: f32[1,64], index: 2, kind: input, shape index: {}]
  %s3 = inlined_call_operand.vmem [shape: f32[64,128], index: 3, kind: input, shape index: {}]
  %s4 = inlined_call_operand.vmem [shape: f32[1,128], index: 4, kind: input, shape index: {}]
  %s5 = inlined_call_operand.hbm [shape: f32[8,128], index: 5, kind: output, shape index: {}]
  %s6 = sld [smem:[#allocation0]]
  $region30: #{tpu_custom_call.1} parent=0
    _
  %s8 = ssub.s32 1, %s6
  %s9 = scalar_select 0, %s8, %s6
  $region1: #{tpu_custom_call.1} parent=0
    #allocation2 [shape = 'u8[4096]{0}', space=vmem, size = 0x1000, scoped, tag = 'output window, operand 0, single buffered']
    #allocation3 [shape = 's32[1]{0}', space=sflag, size = 0x4, scoped, tag = 'scoped memory for tpu_custom_call.1']
    %10 = vsyncpa [#allocation3], 0
    // Predicated region
    $region2: #{tpu_custom_call.1} parent=1 // pred_check
      _
    $region3: #{tpu_custom_call.1} parent=1 // pred_check_branch
      %12 = sbr.rel (0) target = $region5
    $region4: #{tpu_custom_call.1} parent=1 // pred_region
      _
    $region5: #{tpu_custom_call.1} parent=1 // pred_fallthru
      _
    // Predicated region
    $region6: #{tpu_custom_call.1} parent=1 // pred_check
      _
    $region7: #{tpu_custom_call.1} parent=1 // pred_check_branch
      %14 = sbr.rel (0) target = $region9
    $region8: #{tpu_custom_call.1} parent=1 // pred_region
      _
    $region9: #{tpu_custom_call.1} parent=1 // pred_fallthru
      _
    // Predicated region
    $region10: #{tpu_custom_call.1} parent=1 // pred_check
      _
    $region11: #{tpu_custom_call.1} parent=1 // pred_check_branch
      %16 = sbr.rel (0) target = $region13
    $region12: #{tpu_custom_call.1} parent=1 // pred_region
      _
    $region13: #{tpu_custom_call.1} parent=1 // pred_fallthru
      _
    // Predicated region
    $region14: #{tpu_custom_call.1} parent=1 // pred_check
      _
    $region15: #{tpu_custom_call.1} parent=1 // pred_check_branch
      %18 = sbr.rel (0) target = $region17
    $region16: #{tpu_custom_call.1} parent=1 // pred_region
      _
    $region17: #{tpu_custom_call.1} parent=1 // pred_fallthru
      _
    // Predicated region
    $region18: #{tpu_custom_call.1} parent=1 // pred_check
      _
    $region19: #{tpu_custom_call.1} parent=1 // pred_check_branch
      %20 = sbr.rel (0) target = $region21
    $region20: #{tpu_custom_call.1} parent=1 // pred_region
      _
    $region21: #{tpu_custom_call.1} parent=1 // pred_fallthru
      _
    %v22 = vld [vmem:[%s0] sm:$0xff]
    %v23 = vpack.c.bf16 %v22, %v22
    %v24 = vld [vmem:[%s1] sm:$0xf]
    %v25 = vld [vmem:[%s1 + $0x4] sm:$0xf]
    %v26 = vld [vmem:[%s1 + $0x8] sm:$0xf]
    %v27 = vld [vmem:[%s1 + $0xc] sm:$0xf]
    %v28 = vld [vmem:[%s1 + $0x10] sm:$0xf]
    %v29 = vld [vmem:[%s1 + $0x14] sm:$0xf]
    %v30 = vld [vmem:[%s1 + $0x18] sm:$0xf]
    %v31 = vld [vmem:[%s1 + $0x1c] sm:$0xf]
    %v32 = vld [vmem:[%s1 + $0x20] sm:$0xf]
    %v33 = vld [vmem:[%s1 + $0x24] sm:$0xf]
    %v34 = vld [vmem:[%s1 + $0x28] sm:$0xf]
    %v35 = vld [vmem:[%s1 + $0x2c] sm:$0xf]
    %v36 = vld [vmem:[%s1 + $0x30] sm:$0xf]
    %v37 = vld [vmem:[%s1 + $0x34] sm:$0xf]
    %v38 = vld [vmem:[%s1 + $0x38] sm:$0xf]
    %v39 = vld [vmem:[%s1 + $0x3c] sm:$0xf]
    %v40 = vld [vmem:[%s2] sm:$0x1]
    %v42 = vlaneseq
    %v43 = vshrl.u32 %v42, 7
    %v44 = vsub.s32 0, %v43
    %v45 = vrot.slane %v40, %v44
    %v63 = vunpack.c.l.b16 %v24
    %v64 = vunpack.c.l.b16 %v25
    %v65 = vunpack.c.l.b16 %v26
    %v66 = vunpack.c.l.b16 %v27
    %v67 = vunpack.c.l.b16 %v28
    %v68 = vunpack.c.l.b16 %v29
    %v69 = vunpack.c.l.b16 %v30
    %v70 = vunpack.c.l.b16 %v31
    %v71 = vunpack.c.l.b16 %v32
    %v72 = vunpack.c.l.b16 %v33
    %v73 = vunpack.c.l.b16 %v34
    %v74 = vunpack.c.l.b16 %v35
    %v75 = vunpack.c.l.b16 %v36
    %v76 = vunpack.c.l.b16 %v37
    %v77 = vunpack.c.l.b16 %v38
    %v78 = vunpack.c.l.b16 %v39
    %v79 = vpack.c.b16 %v64, %v63
    %v80 = vpack.c.b16 %v66, %v65
    %v81 = vpack.c.b16 %v68, %v67
    %v82 = vpack.c.b16 %v70, %v69
    %v83 = vpack.c.b16 %v72, %v71
    %v84 = vpack.c.b16 %v74, %v73
    %v85 = vpack.c.b16 %v76, %v75
    %v86 = vpack.c.b16 %v78, %v77
    %95 = vmatprep.subr.bf16.mxu0 0
    %96 = vmatpush1.bf16.msra.mxu0 %v79
    %97 = vmatprep.subr.bf16.mxu0 0
    %98 = vmatpush1.bf16.msra.mxu0 %v80
    %99 = vmatprep.subr.bf16.mxu0 0
    %100 = vmatpush1.bf16.msra.mxu0 %v81
    %101 = vmatprep.subr.bf16.mxu0 0
    %102 = vmatpush1.bf16.msra.mxu0 %v82
    %103 = vmatprep.subr.bf16.mxu0 0
    %104 = vmatpush1.bf16.msra.mxu0 %v83
    %105 = vmatprep.subr.bf16.mxu0 0
    %106 = vmatpush1.bf16.msra.mxu0 %v84
    %107 = vmatprep.subr.bf16.mxu0 0
    %108 = vmatpush1.bf16.msra.mxu0 %v85
    %109 = vmatprep.subr.bf16.mxu0 0
    %110 = vmatpush1.bf16.msra.mxu0 %v86
    %111 = vmatprep.subr.bf16.mxu0 0
    %112 = vmatpush1.bf16.msra.mxu0 0
    %113 = vmatprep.subr.bf16.mxu0 0
    %114 = vmatpush1.bf16.msra.mxu0 0
    %115 = vmatprep.subr.bf16.mxu0 0
    %116 = vmatpush1.bf16.msra.mxu0 0
    %117 = vmatprep.subr.bf16.mxu0 0
    %118 = vmatpush1.bf16.msra.mxu0 0
    %119 = vmatprep.subr.bf16.mxu0 0
    %120 = vmatpush1.bf16.msra.mxu0 0
    %121 = vmatprep.subr.bf16.mxu0 0
    %122 = vmatpush1.bf16.msra.mxu0 0
    %123 = vmatprep.subr.bf16.mxu0 0
    %124 = vmatpush1.bf16.msra.mxu0 0
    %125 = vmatprep.subr.bf16.mxu0 0
    %126 = vmatpush1.bf16.msra.mxu0 0
    %127 = vmatprep.mubr.bf16.mxu0 0
    %128 = vmatmul.mubr.bf16.gmra.mrb[0].mxu0 %v23
    %v129 = vpop.f32.mrb[0].mxu0
    %v130 = vadd.f32 %v45, %v129
    %v131 = vpop.f32.mrb[0].mxu0
    %v132 = vpop.f32.mrb[0].mxu0
    %v133 = vpop.f32.mrb[0].mxu0
    %134 = vdwg.mxu0
    %v135 = vmax.f32 %v130, 0.0
    %v136 = vld [vmem:[%s3] sm:$0xff]
    %v137 = vld [vmem:[%s3 + $0x8] sm:$0xff]
    %v138 = vld [vmem:[%s3 + $0x10] sm:$0xff]
    %v139 = vld [vmem:[%s3 + $0x18] sm:$0xff]
    %v140 = vld [vmem:[%s3 + $0x20] sm:$0xff]
    %v141 = vld [vmem:[%s3 + $0x28] sm:$0xff]
    %v142 = vld [vmem:[%s3 + $0x30] sm:$0xff]
    %v143 = vld [vmem:[%s3 + $0x38] sm:$0xff]
    %v144 = vld [vmem:[%s4] sm:$0x1]
    %v146 = vlaneseq
    %v147 = vshrl.u32 %v146, 7
    %v148 = vsub.s32 0, %v147
    %v149 = vrot.slane %v144, %v148
    %vm151 = vcmask 523264
    %v153 = vsel %vm151, %v135, 0
    %155 = vmatprep.subr.mxu0 0.0
    %156 = vmatpush1.msra.mxu0 %v136
    %157 = vmatprep.subr.mxu0 0.0
    %158 = vmatpush1.msra.mxu0 %v137
    %159 = vmatprep.subr.mxu0 0.0
    %160 = vmatpush1.msra.mxu0 %v138
    %161 = vmatprep.subr.mxu0 0.0
    %162 = vmatpush1.msra.mxu0 %v139
    %163 = vmatprep.subr.mxu0 0.0
    %164 = vmatpush1.msra.mxu0 %v140
    %165 = vmatprep.subr.mxu0 0.0
    %166 = vmatpush1.msra.mxu0 %v141
    %167 = vmatprep.subr.mxu0 0.0
    %168 = vmatpush1.msra.mxu0 %v142
    %169 = vmatprep.subr.mxu0 0.0
    %170 = vmatpush1.msra.mxu0 %v143
    %171 = vmatprep.subr.mxu0 0.0
    %172 = vmatpush1.msra.mxu0 0.0
    %173 = vmatprep.subr.mxu0 0.0
    %174 = vmatpush1.msra.mxu0 0.0
    %175 = vmatprep.subr.mxu0 0.0
    %176 = vmatpush1.msra.mxu0 0.0
    %177 = vmatprep.subr.mxu0 0.0
    %178 = vmatpush1.msra.mxu0 0.0
    %179 = vmatprep.subr.mxu0 0.0
    %180 = vmatpush1.msra.mxu0 0.0
    %181 = vmatprep.subr.mxu0 0.0
    %182 = vmatpush1.msra.mxu0 0.0
    %183 = vmatprep.subr.mxu0 0.0
    %184 = vmatpush1.msra.mxu0 0.0
    %185 = vmatprep.subr.mxu0 0.0
    %186 = vmatpush1.msra.mxu0 0.0
    %187 = vmatprep.subr.mxu0 0.0
    %188 = vmatpush1.msra.mxu0 0.0
    %189 = vmatprep.subr.mxu0 0.0
    %190 = vmatpush1.msra.mxu0 0.0
    %191 = vmatprep.subr.mxu0 0.0
    %192 = vmatpush1.msra.mxu0 0.0
    %193 = vmatprep.subr.mxu0 0.0
    %194 = vmatpush1.msra.mxu0 0.0
    %195 = vmatprep.subr.mxu0 0.0
    %196 = vmatpush1.msra.mxu0 0.0
    %197 = vmatprep.subr.mxu0 0.0
    %198 = vmatpush1.msra.mxu0 0.0
    %199 = vmatprep.subr.mxu0 0.0
    %200 = vmatpush1.msra.mxu0 0.0
    %201 = vmatprep.subr.mxu0 0.0
    %202 = vmatpush1.msra.mxu0 0.0
    %203 = vmatprep.subr.mxu0 0.0
    %204 = vmatpush1.msra.mxu0 0.0
    %205 = vmatprep.subr.mxu0 0.0
    %206 = vmatpush1.msra.mxu0 0.0
    %207 = vmatprep.subr.mxu0 0.0
    %208 = vmatpush1.msra.mxu0 0.0
    %209 = vmatprep.subr.mxu0 0.0
    %210 = vmatpush1.msra.mxu0 0.0
    %211 = vmatprep.subr.mxu0 0.0
    %212 = vmatpush1.msra.mxu0 0.0
    %213 = vmatprep.subr.mxu0 0.0
    %214 = vmatpush1.msra.mxu0 0.0
    %215 = vmatprep.subr.mxu0 0.0
    %216 = vmatpush1.msra.mxu0 0.0
    %217 = vmatprep.subr.mxu0 0.0
    %218 = vmatpush1.msra.mxu0 0.0
    %219 = vmatprep.mubr.f32.mxu0 0.0
    %220 = vmatmul.mubr.f32.gmra.mrb[0].mxu0 %v153
    %v221 = vpop.f32.mrb[0].mxu0
    %v222 = vadd.f32 %v149, %v221
    %v223 = vpop.f32.mrb[0].mxu0
    %224 = vdwg.mxu0
    %225 = vmax.xlane.f32.xlu0 %v222
    %v226 = vpop.xlane.xlu0 %225
    %v227 = vsub.f32 %v222, %v226
    %v228 = vmul.f32 %v227, 1.442695
    %v229 = vpow.pop %v228
    %230 = vadd.xlane.f32.xlu0 %v229
    %v231 = vpop.xlane.xlu0 %230
    %v232 = vlog2.pop %v231
    %v233 = vmul.f32 %v232, 0.6931472
    %v234 = vadd.f32 %v226, %v233
    %v235 = vsub.f32 %v222, %v234
    %236 = vst [vmem:[#allocation2] sm:$0xff] %v235
    // Predicated region
    $region22: #{tpu_custom_call.1} parent=1 // pred_check
      _
    $region23: #{tpu_custom_call.1} parent=1 // pred_check_branch
      %238 = sbr.rel (0) target = $region25
    $region24: #{tpu_custom_call.1} parent=1 // pred_region
      %s240 = ssub.s32 128, 128
      %241 = vsyncadd [#allocation3], %s240
      %s243 = sshll.u32 [#allocation2], 4
      %s244 = int_to_ptr.vmem [resolvable:$true] %s243
      %246 = dma.vmem_to_hbm [thread:$0]  %s244, 128, %s5, [#allocation3]
    $region25: #{tpu_custom_call.1} parent=1 // pred_fallthru
      _
    // Predicated region
    $region26: #{tpu_custom_call.1} parent=1 // pred_check
      _
    $region27: #{tpu_custom_call.1} parent=1 // pred_check_branch
      %248 = sbr.rel (0) target = $region29
    $region28: #{tpu_custom_call.1} parent=1 // pred_region
      %249 = dma.done [#allocation3], 128
    $region29: #{tpu_custom_call.1} parent=1 // pred_fallthru
      _
    %250 = vsyncpa [#allocation3], 1

</llo_original>
